<compile_context>
chip_gen: v7x
topology: tpu7x:2x2x1
jax: 0.10.0
libtpu: 0.0.40
codegen_flags: <defaults>
</compile_context>

<pallas_src>
import functools

import jax
import jax.numpy as jnp
from jax.experimental import pallas as pl
from jax.experimental.pallas import tpu as pltpu

_LANES = 128


def _round_up(x: int, m: int) -> int:
    return ((x + m - 1) // m) * m


def _gap_reg_kernel(pred_ref, grp_ref, o_ref, sum_ref, cnt_ref, *,
                    num_group: int, mode: str, n_valid: int):
    step = pl.program_id(0)

    # Zero the per-group accumulators on the first grid step.
    @pl.when(step == 0)
    def _():
        sum_ref[...] = jnp.zeros_like(sum_ref)
        cnt_ref[...] = jnp.zeros_like(cnt_ref)

    pred = pred_ref[...]                      # (blk, 128) f32
    grp = grp_ref[...].astype(jnp.int32)      # widen once per block (cheap unpack)

    # Groups 0 .. G-2: one masked pass each.  mask_f is reused for sum and count;
    # only the sublane axis is reduced per step — the expensive cross-lane reduce
    # is deferred to the epilogue.
    for g in range(num_group - 1):
        mask_f = (grp == g).astype(jnp.float32)
        sum_ref[pl.ds(g, 1), :] += jnp.sum(pred * mask_f, axis=0, keepdims=True)
        cnt_ref[pl.ds(g, 1), :] += jnp.sum(mask_f, axis=0, keepdims=True)

    # Row G-1 accumulates the running total sum (padding has pred == 0); the last
    # group's sum is derived from it by subtraction in the epilogue.
    sum_ref[pl.ds(num_group - 1, 1), :] += jnp.sum(pred, axis=0, keepdims=True)

    # Epilogue (last grid step only): one cross-lane reduce per accumulator row,
    # then the tiny pairwise-gap computation on scalars.
    @pl.when(step == pl.num_programs(0) - 1)
    def _():
        g_sums = [jnp.sum(sum_ref[pl.ds(g, 1), :]) for g in range(num_group - 1)]
        g_cnts = [jnp.sum(cnt_ref[pl.ds(g, 1), :]) for g in range(num_group - 1)]
        tot_s = jnp.sum(sum_ref[pl.ds(num_group - 1, 1), :])
        g_sums.append(tot_s - sum(g_sums))
        # Total valid count is the static batch size (group ids assumed in range).
        g_cnts.append(jnp.float32(n_valid) - sum(g_cnts))

        # Empty group -> 0/0 = NaN, same as torch.mean of an empty tensor.
        means = [g_sums[g] / g_cnts[g] for g in range(num_group)]

        acc = None
        n_pairs = 0
        for i in range(num_group - 1):
            for j in range(i + 1, num_group):
                gap = jnp.abs(means[i] - means[j])
                n_pairs += 1
                if acc is None:
                    acc = gap
                elif mode == "mean":
                    acc = acc + gap
                else:  # "max"
                    acc = jnp.maximum(acc, gap)
        if mode == "mean":
            acc = acc * jnp.float32(1.0 / n_pairs)
        o_ref[...] = jnp.reshape(acc, (1, 1)).astype(o_ref.dtype)


def gap_reg(batch_pred: jax.Array, batch_group: jax.Array, *,
            num_group: int, mode: str, block_rows: int = 4096) -> jax.Array:
    if mode not in ("mean", "max"):
        raise ValueError(mode)
    if num_group < 2:
        raise ValueError("num_group must be >= 2")
    n = batch_pred.shape[0]

    # Dense (rows, 128) layout; rows is a multiple of the block size, which is a
    # multiple of 8 sublanes.
    rows_min = max(1, -(-n // _LANES))
    blk = _round_up(min(block_rows, _round_up(rows_min, 8)), 8)
    rows = _round_up(rows_min, blk)
    padded = rows * _LANES

    grp_dtype = jnp.int8 if num_group <= 127 else jnp.int32
    pred = batch_pred.astype(jnp.float32)
    grp = batch_group.astype(grp_dtype)
    pad = padded - n
    if pad:
        # TODO(synk): fuse this padding copy into the producing op to avoid one
        # extra HBM pass when n is not a multiple of 128.
        pred = jnp.concatenate([pred, jnp.zeros((pad,), jnp.float32)])
        grp = jnp.concatenate([grp, jnp.full((pad,), -1, grp_dtype)])
    pred2d = pred.reshape(rows, _LANES)
    grp2d = grp.reshape(rows, _LANES)

    kernel = functools.partial(_gap_reg_kernel, num_group=num_group, mode=mode,
                               n_valid=n)
    out = pl.pallas_call(
        kernel,
        out_shape=jax.ShapeDtypeStruct((1, 1), jnp.float32),
        grid=(rows // blk,),
        in_specs=[
            pl.BlockSpec((blk, _LANES), lambda i: (i, 0)),
            pl.BlockSpec((blk, _LANES), lambda i: (i, 0)),
        ],
        out_specs=pl.BlockSpec((1, 1), lambda i: (0, 0)),
        scratch_shapes=[
            pltpu.VMEM((num_group, _LANES), jnp.float32),   # group sums + total row
            pltpu.VMEM((num_group, _LANES), jnp.float32),   # group counts (G-1 used)
        ],
        compiler_params=pltpu.CompilerParams(
            dimension_semantics=("arbitrary",),  # reduction axis, resident acc
            vmem_limit_bytes=32 * 1024 * 1024,
        ),
    )(pred2d, grp2d)
    return out[0, 0]


def _gap_reg_ref(batch_pred, batch_group, *, num_group, mode):
    means = []
    for g in range(num_group):
        m = batch_group == g
        means.append(jnp.sum(jnp.where(m, batch_pred, 0.0))
                     / jnp.sum(m.astype(jnp.float32)))
    gaps = []
    for i in range(num_group - 1):
        for j in range(i + 1, num_group):
            gaps.append(jnp.abs(means[i] - means[j]))
    g = jnp.stack(gaps)
    return jnp.mean(g) if mode == "mean" else jnp.max(g)


if __name__ == "__main__":
    NUM_GROUP = 3
    ok = True
    key = jax.random.PRNGKey(0)
    # Second case uses a tiny block so the multi-step grid + padding paths are
    # exercised even at small N.
    for n, blk_rows in ((256, 4096), (3000, 8)):
        key, kp, kg = jax.random.split(key, 3)
        batch_pred = jax.random.normal(kp, (n,), dtype=jnp.float32)
        batch_group = jax.random.randint(kg, (n,), 0, NUM_GROUP, dtype=jnp.int32)
        # Ensure every group is non-empty (avoid NaN edge case in the demo).
        batch_group = batch_group.at[:NUM_GROUP].set(
            jnp.arange(NUM_GROUP, dtype=jnp.int32))
        for mode in ("mean", "max"):
            out = gap_reg(batch_pred, batch_group, num_group=NUM_GROUP,
                          mode=mode, block_rows=blk_rows)
            out = jax.block_until_ready(out)
            ref = _gap_reg_ref(batch_pred, batch_group,
                               num_group=NUM_GROUP, mode=mode)
            if not jnp.allclose(out, ref, atol=1e-5, rtol=1e-5):
                ok = False
                print(f"MISMATCH n={n} mode={mode}: kernel={out} ref={ref}")
    if ok:
        print("KERNEL_OK")
</pallas_src>

<mosaic_0001>
module attributes {stable_mosaic.version = 11 : i64} {
  func.func @_gap_reg_kernel(%arg0: i32, %arg1: memref<8x128xf32, #tpu.memory_space<vmem>>, %arg2: memref<8x128xi8, #tpu.memory_space<vmem>>, %arg3: memref<1x1xf32, #tpu.memory_space<vmem>>, %arg4: memref<3x128xf32, #tpu.memory_space<vmem>>, %arg5: memref<3x128xf32, #tpu.memory_space<vmem>>) attributes {dimension_semantics = [#tpu.dimension_semantics<arbitrary>], iteration_bounds = array<i64: 1>, scalar_prefetch = 0 : i64, scratch_operands = 2 : i64, tpu.core_type = #tpu.core_type<tc>, window_params = [{transform_indices = @transform_0, window_bounds = array<i64: 8, 128>}, {transform_indices = @transform_1, window_bounds = array<i64: 8, 128>}, {pipeline_mode = #tpu.pipeline_mode<synchronous>, transform_indices = @transform_2, window_bounds = array<i64: 1, 1>}]} {
    %c0_i32 = arith.constant 0 : i32
    %0 = arith.cmpi eq, %arg0, %c0_i32 : i32
    %1 = arith.extui %0 : i1 to i32
    %c0_i32_0 = arith.constant 0 : i32
    %2 = arith.cmpi ne, %1, %c0_i32_0 : i32
    scf.if %2 {
      %cst_29 = arith.constant 0.000000e+00 : f32
      %44 = vector.broadcast %cst_29 : f32 to vector<3x128xf32>
      %c0_30 = arith.constant 0 : index
      %c0_31 = arith.constant 0 : index
      %45 = vector.load %arg4[%c0_30, %c0_31] : memref<3x128xf32, #tpu.memory_space<vmem>>, vector<3x128xf32>
      tpu.vector_store %arg4[%c0_30, %c0_31], %44 {strides = array<i32>} : memref<3x128xf32, #tpu.memory_space<vmem>>, vector<3x128xf32>,
      %cst_32 = arith.constant 0.000000e+00 : f32
      %46 = vector.broadcast %cst_32 : f32 to vector<3x128xf32>
      %c0_33 = arith.constant 0 : index
      %c0_34 = arith.constant 0 : index
      %47 = vector.load %arg5[%c0_33, %c0_34] : memref<3x128xf32, #tpu.memory_space<vmem>>, vector<3x128xf32>
      tpu.vector_store %arg5[%c0_33, %c0_34], %46 {strides = array<i32>} : memref<3x128xf32, #tpu.memory_space<vmem>>, vector<3x128xf32>,
    } else {
    }
    %c0 = arith.constant 0 : index
    %c0_1 = arith.constant 0 : index
    %3 = vector.load %arg1[%c0, %c0_1] : memref<8x128xf32, #tpu.memory_space<vmem>>, vector<8x128xf32>
    %c0_2 = arith.constant 0 : index
    %c0_3 = arith.constant 0 : index
    %4 = vector.load %arg2[%c0_2, %c0_3] : memref<8x128xi8, #tpu.memory_space<vmem>>, vector<8x128xi8>
    %5 = arith.extsi %4 : vector<8x128xi8> to vector<8x128xi32>
    %c0_i32_4 = arith.constant 0 : i32
    %6 = vector.broadcast %c0_i32_4 : i32 to vector<8x128xi32>
    %7 = arith.cmpi eq, %5, %6 : vector<8x128xi32>
    %8 = arith.extui %7 : vector<8x128xi1> to vector<8x128xi32>
    %9 = arith.sitofp %8 : vector<8x128xi32> to vector<8x128xf32>
    %c0_5 = arith.constant 0 : index
    %c0_6 = arith.constant 0 : index
    %10 = vector.load %arg4[%c0_5, %c0_6] : memref<3x128xf32, #tpu.memory_space<vmem>>, vector<1x128xf32>
    %11 = arith.mulf %3, %9 : vector<8x128xf32>
    %cst = arith.constant dense<0.000000e+00> : vector<128xf32>
    %12 = vector.multi_reduction <add>, %11, %cst [0] : vector<8x128xf32> to vector<128xf32>
    %13 = vector.shape_cast %12 : vector<128xf32> to vector<1x128xf32>
    %14 = arith.addf %10, %13 : vector<1x128xf32>
    %c0_7 = arith.constant 0 : index
    %c0_8 = arith.constant 0 : index
    %15 = vector.load %arg4[%c0_7, %c0_8] : memref<3x128xf32, #tpu.memory_space<vmem>>, vector<1x128xf32>
    tpu.vector_store %arg4[%c0_7, %c0_8], %14 {strides = array<i32>} : memref<3x128xf32, #tpu.memory_space<vmem>>, vector<1x128xf32>,
    %c0_9 = arith.constant 0 : index
    %c0_10 = arith.constant 0 : index
    %16 = vector.load %arg5[%c0_9, %c0_10] : memref<3x128xf32, #tpu.memory_space<vmem>>, vector<1x128xf32>
    %cst_11 = arith.constant dense<0.000000e+00> : vector<128xf32>
    %17 = vector.multi_reduction <add>, %9, %cst_11 [0] : vector<8x128xf32> to vector<128xf32>
    %18 = vector.shape_cast %17 : vector<128xf32> to vector<1x128xf32>
    %19 = arith.addf %16, %18 : vector<1x128xf32>
    %c0_12 = arith.constant 0 : index
    %c0_13 = arith.constant 0 : index
    %20 = vector.load %arg5[%c0_12, %c0_13] : memref<3x128xf32, #tpu.memory_space<vmem>>, vector<1x128xf32>
    tpu.vector_store %arg5[%c0_12, %c0_13], %19 {strides = array<i32>} : memref<3x128xf32, #tpu.memory_space<vmem>>, vector<1x128xf32>,
    %c1_i32 = arith.constant 1 : i32
    %21 = vector.broadcast %c1_i32 : i32 to vector<8x128xi32>
    %22 = arith.cmpi eq, %5, %21 : vector<8x128xi32>
    %23 = arith.extui %22 : vector<8x128xi1> to vector<8x128xi32>
    %24 = arith.sitofp %23 : vector<8x128xi32> to vector<8x128xf32>
    %c1 = arith.constant 1 : index
    %c0_14 = arith.constant 0 : index
    %25 = vector.load %arg4[%c1, %c0_14] : memref<3x128xf32, #tpu.memory_space<vmem>>, vector<1x128xf32>
    %26 = arith.mulf %3, %24 : vector<8x128xf32>
    %cst_15 = arith.constant dense<0.000000e+00> : vector<128xf32>
    %27 = vector.multi_reduction <add>, %26, %cst_15 [0] : vector<8x128xf32> to vector<128xf32>
    %28 = vector.shape_cast %27 : vector<128xf32> to vector<1x128xf32>
    %29 = arith.addf %25, %28 : vector<1x128xf32>
    %c1_16 = arith.constant 1 : index
    %c0_17 = arith.constant 0 : index
    %30 = vector.load %arg4[%c1_16, %c0_17] : memref<3x128xf32, #tpu.memory_space<vmem>>, vector<1x128xf32>
    tpu.vector_store %arg4[%c1_16, %c0_17], %29 {strides = array<i32>} : memref<3x128xf32, #tpu.memory_space<vmem>>, vector<1x128xf32>,
    %c1_18 = arith.constant 1 : index
    %c0_19 = arith.constant 0 : index
    %31 = vector.load %arg5[%c1_18, %c0_19] : memref<3x128xf32, #tpu.memory_space<vmem>>, vector<1x128xf32>
    %cst_20 = arith.constant dense<0.000000e+00> : vector<128xf32>
    %32 = vector.multi_reduction <add>, %24, %cst_20 [0] : vector<8x128xf32> to vector<128xf32>
    %33 = vector.shape_cast %32 : vector<128xf32> to vector<1x128xf32>
    %34 = arith.addf %31, %33 : vector<1x128xf32>
    %c1_21 = arith.constant 1 : index
    %c0_22 = arith.constant 0 : index
    %35 = vector.load %arg5[%c1_21, %c0_22] : memref<3x128xf32, #tpu.memory_space<vmem>>, vector<1x128xf32>
    tpu.vector_store %arg5[%c1_21, %c0_22], %34 {strides = array<i32>} : memref<3x128xf32, #tpu.memory_space<vmem>>, vector<1x128xf32>,
    %c2 = arith.constant 2 : index
    %c0_23 = arith.constant 0 : index
    %36 = vector.load %arg4[%c2, %c0_23] : memref<3x128xf32, #tpu.memory_space<vmem>>, vector<1x128xf32>
    %cst_24 = arith.constant dense<0.000000e+00> : vector<128xf32>
    %37 = vector.multi_reduction <add>, %3, %cst_24 [0] : vector<8x128xf32> to vector<128xf32>
    %38 = vector.shape_cast %37 : vector<128xf32> to vector<1x128xf32>
    %39 = arith.addf %36, %38 : vector<1x128xf32>
    %c2_25 = arith.constant 2 : index
    %c0_26 = arith.constant 0 : index
    %40 = vector.load %arg4[%c2_25, %c0_26] : memref<3x128xf32, #tpu.memory_space<vmem>>, vector<1x128xf32>
    tpu.vector_store %arg4[%c2_25, %c0_26], %39 {strides = array<i32>} : memref<3x128xf32, #tpu.memory_space<vmem>>, vector<1x128xf32>,
    %c0_i32_27 = arith.constant 0 : i32
    %41 = arith.cmpi eq, %arg0, %c0_i32_27 : i32
    %42 = arith.extui %41 : i1 to i32
    %c0_i32_28 = arith.constant 0 : i32
    %43 = arith.cmpi ne, %42, %c0_i32_28 : i32
    scf.if %43 {
      %c0_29 = arith.constant 0 : index
      %c0_30 = arith.constant 0 : index
      %44 = vector.load %arg4[%c0_29, %c0_30] : memref<3x128xf32, #tpu.memory_space<vmem>>, vector<1x128xf32>
      %45 = vector.shape_cast %44 : vector<1x128xf32> to vector<1x1x128xf32>
      %cst_31 = arith.constant dense<0.000000e+00> : vector<1xf32>
      %46 = vector.multi_reduction <add>, %45, %cst_31 [1, 2] : vector<1x1x128xf32> to vector<1xf32>
      %47 = vector.shape_cast %46 : vector<1xf32> to vector<1x1x1xf32>
      %48 = vector.extract %47[0, 0, 0] : f32 from vector<1x1x1xf32>
      %c1_32 = arith.constant 1 : index
      %c0_33 = arith.constant 0 : index
      %49 = vector.load %arg4[%c1_32, %c0_33] : memref<3x128xf32, #tpu.memory_space<vmem>>, vector<1x128xf32>
      %50 = vector.shape_cast %49 : vector<1x128xf32> to vector<1x1x128xf32>
      %cst_34 = arith.constant dense<0.000000e+00> : vector<1xf32>
      %51 = vector.multi_reduction <add>, %50, %cst_34 [1, 2] : vector<1x1x128xf32> to vector<1xf32>
      %52 = vector.shape_cast %51 : vector<1xf32> to vector<1x1x1xf32>
      %53 = vector.extract %52[0, 0, 0] : f32 from vector<1x1x1xf32>
      %c0_35 = arith.constant 0 : index
      %c0_36 = arith.constant 0 : index
      %54 = vector.load %arg5[%c0_35, %c0_36] : memref<3x128xf32, #tpu.memory_space<vmem>>, vector<1x128xf32>
      %55 = vector.shape_cast %54 : vector<1x128xf32> to vector<1x1x128xf32>
      %cst_37 = arith.constant dense<0.000000e+00> : vector<1xf32>
      %56 = vector.multi_reduction <add>, %55, %cst_37 [1, 2] : vector<1x1x128xf32> to vector<1xf32>
      %57 = vector.shape_cast %56 : vector<1xf32> to vector<1x1x1xf32>
      %58 = vector.extract %57[0, 0, 0] : f32 from vector<1x1x1xf32>
      %c1_38 = arith.constant 1 : index
      %c0_39 = arith.constant 0 : index
      %59 = vector.load %arg5[%c1_38, %c0_39] : memref<3x128xf32, #tpu.memory_space<vmem>>, vector<1x128xf32>
      %60 = vector.shape_cast %59 : vector<1x128xf32> to vector<1x1x128xf32>
      %cst_40 = arith.constant dense<0.000000e+00> : vector<1xf32>
      %61 = vector.multi_reduction <add>, %60, %cst_40 [1, 2] : vector<1x1x128xf32> to vector<1xf32>
      %62 = vector.shape_cast %61 : vector<1xf32> to vector<1x1x1xf32>
      %63 = vector.extract %62[0, 0, 0] : f32 from vector<1x1x1xf32>
      %c2_41 = arith.constant 2 : index
      %c0_42 = arith.constant 0 : index
      %64 = vector.load %arg4[%c2_41, %c0_42] : memref<3x128xf32, #tpu.memory_space<vmem>>, vector<1x128xf32>
      %65 = vector.shape_cast %64 : vector<1x128xf32> to vector<1x1x128xf32>
      %cst_43 = arith.constant dense<0.000000e+00> : vector<1xf32>
      %66 = vector.multi_reduction <add>, %65, %cst_43 [1, 2] : vector<1x1x128xf32> to vector<1xf32>
      %67 = vector.shape_cast %66 : vector<1xf32> to vector<1x1x1xf32>
      %68 = vector.extract %67[0, 0, 0] : f32 from vector<1x1x1xf32>
      %cst_44 = arith.constant 0.000000e+00 : f32
      %69 = arith.addf %cst_44, %48 : f32
      %70 = arith.addf %69, %53 : f32
      %71 = arith.subf %68, %70 : f32
      %cst_45 = arith.constant 0.000000e+00 : f32
      %72 = arith.addf %cst_45, %58 : f32
      %73 = arith.addf %72, %63 : f32
      %cst_46 = arith.constant 2.560000e+02 : f32
      %74 = arith.subf %cst_46, %73 : f32
      %75 = arith.divf %48, %58 : f32
      %76 = arith.divf %53, %63 : f32
      %77 = arith.divf %71, %74 : f32
      %78 = arith.subf %75, %76 : f32
      %79 = math.absf %78 : f32
      %80 = arith.subf %75, %77 : f32
      %81 = math.absf %80 : f32
      %82 = arith.addf %79, %81 : f32
      %83 = arith.subf %76, %77 : f32
      %84 = math.absf %83 : f32
      %85 = arith.addf %82, %84 : f32
      %cst_47 = arith.constant 0.333333343 : f32
      %86 = arith.mulf %85, %cst_47 : f32
      %87 = vector.broadcast %86 : f32 to vector<1x1xf32>
      %c0_48 = arith.constant 0 : index
      %c0_49 = arith.constant 0 : index
      %88 = vector.load %arg3[%c0_48, %c0_49] : memref<1x1xf32, #tpu.memory_space<vmem>>, vector<1x1xf32>
      tpu.vector_store %arg3[%c0_48, %c0_49], %87 {strides = array<i32>} : memref<1x1xf32, #tpu.memory_space<vmem>>, vector<1x1xf32>,
    } else {
    }
    return
  }
  func.func @transform_0(%arg0: i32) -> (i32, i32) {
    %c0_i32 = arith.constant 0 : i32
    %c0_i32_0 = arith.constant 0 : i32
    return %arg0, %c0_i32 : i32, i32
  }
  func.func @transform_1(%arg0: i32) -> (i32, i32) {
    %c0_i32 = arith.constant 0 : i32
    %c0_i32_0 = arith.constant 0 : i32
    return %arg0, %c0_i32 : i32, i32
  }
  func.func @transform_2(%arg0: i32) -> (i32, i32) {
    %c0_i32 = arith.constant 0 : i32
    %c0_i32_0 = arith.constant 0 : i32
    %c0_i32_1 = arith.constant 0 : i32
    return %c0_i32, %c0_i32_0 : i32, i32
  }
}

</mosaic_0001>

<llo_original>
// kernel: tpu_custom_call.1
$region0: #{tpu_custom_call.1}
  #allocation0 [shape = 'u32[]', space=smem, size = 0x4, offset = 0x4, fixed_abs, tag = 'smem constant byte address 0x4 - core index']
  #allocation1 [shape = 'u32[144,128]{1,0:T(1,128)}', space=vmem, size = 0x12000, scoped, tag = 'internal scratch']
  #allocation2 [shape = 'f32[3,128]{1,0:T(4,128)}', space=vmem, size = 0x800, scoped, tag = 'scratch operand']
  #allocation3 [shape = 'f32[3,128]{1,0:T(4,128)}', space=vmem, size = 0x800, scoped, tag = 'scratch operand']
  %s0 = inlined_call_operand.hbm [shape: f32[8,128], index: 0, kind: input, shape index: {}]
  %s1 = inlined_call_operand.vmem [shape: s8[8,128], index: 1, kind: input, shape index: {}]
  %s2 = inlined_call_operand.hbm [shape: f32[1,1], index: 2, kind: output, shape index: {}]
  %s3 = sld [smem:[#allocation0]]
  $region30: #{tpu_custom_call.1} parent=0
    _
  %s5 = ssub.s32 1, %s3
  %s6 = scalar_select 0, %s5, %s3
  $region1: #{tpu_custom_call.1} parent=0
    #allocation4 [shape = 'u8[4096]{0}', space=vmem, size = 0x1000, scoped, tag = 'input window, operand 0, single buffered']
    #allocation5 [shape = 's32[1]{0}', space=sflag, size = 0x4, scoped, tag = 'scoped memory for tpu_custom_call.1']
    #allocation6 [shape = 's32[1]{0}', space=sflag, size = 0x4, scoped, tag = 'scoped memory for tpu_custom_call.1']
    #allocation7 [shape = 'u8[512]{0}', space=vmem, size = 0x400, scoped, tag = 'output window, operand 0, single buffered']
    %7 = vsyncpa [#allocation5], 0
    %8 = vsyncpa [#allocation6], 0
    // Predicated region
    $region2: #{tpu_custom_call.1} parent=1 // pred_check
      _
    $region3: #{tpu_custom_call.1} parent=1 // pred_check_branch
      %10 = sbr.rel (0) target = $region5
    $region4: #{tpu_custom_call.1} parent=1 // pred_region
      %s12 = ssub.s32 128, 128
      %13 = vsyncadd [#allocation5], %s12
      %s15 = sshll.u32 [#allocation4], 4
      %s16 = int_to_ptr.vmem [resolvable:$true] %s15
      %18 = dma.hbm_to_vmem [thread:$0]  %s0, 128, %s16, [#allocation5]
    $region5: #{tpu_custom_call.1} parent=1 // pred_fallthru
      _
    // Predicated region
    $region6: #{tpu_custom_call.1} parent=1 // pred_check
      _
    $region7: #{tpu_custom_call.1} parent=1 // pred_check_branch
      %20 = sbr.rel (0) target = $region9
    $region8: #{tpu_custom_call.1} parent=1 // pred_region
      _
    $region9: #{tpu_custom_call.1} parent=1 // pred_fallthru
      _
    // Predicated region
    $region10: #{tpu_custom_call.1} parent=1 // pred_check
      _
    $region11: #{tpu_custom_call.1} parent=1 // pred_check_branch
      %22 = sbr.rel (0) target = $region13
    $region12: #{tpu_custom_call.1} parent=1 // pred_region
      %23 = dma.done [#allocation5], 128
    $region13: #{tpu_custom_call.1} parent=1 // pred_fallthru
      _
    %p24 = scmp.eq.s32.totalorder 0, 0
    // Predicated region
    $region14: #{tpu_custom_call.1} parent=1 // pred_check
      %p25 = pneg %p24
    $region15: #{tpu_custom_call.1} parent=1 // pred_check_branch
      %27 = sbr.rel (%p25) target = $region17
    $region16: #{tpu_custom_call.1} parent=1 // pred_region
      %28 = vst [vmem:[#allocation2] sm:$0x7] 0.0
      %29 = vst [vmem:[#allocation3] sm:$0x7] 0.0
    $region17: #{tpu_custom_call.1} parent=1 // pred_fallthru
      _
    %v30 = vld [vmem:[#allocation4] sm:$0xff]
    %v31 = vld [vmem:[%s1] sm:$0x3]
    %v32 = vunpack.c.0.s8 %v31
    %vm33 = vcmp.eq.s32.totalorder %v32, 0
    %v34 = vsel %vm33, 1, 0
    %v35 = vcvt.s32.f32 %v34
    %v36 = vld [vmem:[#allocation2] sm:$0x1]
    %v37 = vmul.f32 %v30, %v35
    %v38 = vrot.slane %v37, 4
    %v39 = vadd.f32 %v37, %v38
    %v40 = vrot.slane %v39, 2
    %v41 = vadd.f32 %v39, %v40
    %v42 = vrot.slane %v41, 1
    %v43 = vadd.f32 %v41, %v42
    %v44 = vadd.f32 %v36, %v43
    %45 = vst [vmem:[#allocation2] sm:$0x1] %v44
    %v46 = vld [vmem:[#allocation3] sm:$0x1]
    %v47 = vrot.slane %v35, 4
    %v48 = vadd.f32 %v35, %v47
    %v49 = vrot.slane %v48, 2
    %v50 = vadd.f32 %v48, %v49
    %v51 = vrot.slane %v50, 1
    %v52 = vadd.f32 %v50, %v51
    %v53 = vadd.f32 %v46, %v52
    %54 = vst [vmem:[#allocation3] sm:$0x1] %v53
    %vm55 = vcmp.eq.s32.totalorder %v32, 1
    %v56 = vsel %vm55, 1, 0
    %v57 = vcvt.s32.f32 %v56
    %v58 = vld [vmem:[#allocation2 + $0x1] sm:$0x1]
    %v59 = vmul.f32 %v30, %v57
    %v60 = vrot.slane %v59, 4
    %v61 = vadd.f32 %v59, %v60
    %v62 = vrot.slane %v61, 2
    %v63 = vadd.f32 %v61, %v62
    %v64 = vrot.slane %v63, 1
    %v65 = vadd.f32 %v63, %v64
    %v66 = vadd.f32 %v58, %v65
    %67 = vst [vmem:[#allocation2 + $0x1] sm:$0x1] %v66
    %v68 = vld [vmem:[#allocation3 + $0x1] sm:$0x1]
    %v69 = vrot.slane %v57, 4
    %v70 = vadd.f32 %v57, %v69
    %v71 = vrot.slane %v70, 2
    %v72 = vadd.f32 %v70, %v71
    %v73 = vrot.slane %v72, 1
    %v74 = vadd.f32 %v72, %v73
    %v75 = vadd.f32 %v68, %v74
    %76 = vst [vmem:[#allocation3 + $0x1] sm:$0x1] %v75
    %v77 = vld [vmem:[#allocation2 + $0x2] sm:$0x1]
    %v78 = vrot.slane %v30, 4
    %v79 = vadd.f32 %v30, %v78
    %v80 = vrot.slane %v79, 2
    %v81 = vadd.f32 %v79, %v80
    %v82 = vrot.slane %v81, 1
    %v83 = vadd.f32 %v81, %v82
    %v84 = vadd.f32 %v77, %v83
    %85 = vst [vmem:[#allocation2 + $0x2] sm:$0x1] %v84
    // Predicated region
    $region18: #{tpu_custom_call.1} parent=1 // pred_check
      %p86 = pneg %p24
    $region19: #{tpu_custom_call.1} parent=1 // pred_check_branch
      %88 = sbr.rel (%p86) target = $region21
    $region20: #{tpu_custom_call.1} parent=1 // pred_region
      %v89 = vld [vmem:[#allocation2] sm:$0x1]
      %vm90 = vcmask 1040384
      %v91 = vsel %vm90, %v89, 0.0
      %92 = vadd.xlane.f32.xlu0 %v91
      %v93 = vpop.xlane.xlu0 %92
      %v94 = vrot.slane %v93, 4
      %v95 = vadd.f32 %v93, %v94
      %v96 = vrot.slane %v95, 2
      %v97 = vadd.f32 %v95, %v96
      %v98 = vrot.slane %v97, 1
      %v99 = vadd.f32 %v97, %v98
      %s100 = vtos %v99
      %v101 = vld [vmem:[#allocation2 + $0x1] sm:$0x1]
      %v102 = vsel %vm90, %v101, 0.0
      %103 = vadd.xlane.f32.xlu0 %v102
      %v104 = vpop.xlane.xlu0 %103
      %v105 = vrot.slane %v104, 4
      %v106 = vadd.f32 %v104, %v105
      %v107 = vrot.slane %v106, 2
      %v108 = vadd.f32 %v106, %v107
      %v109 = vrot.slane %v108, 1
      %v110 = vadd.f32 %v108, %v109
      %s111 = vtos %v110
      %v112 = vld [vmem:[#allocation3] sm:$0x1]
      %v113 = vsel %vm90, %v112, 0.0
      %114 = vadd.xlane.f32.xlu0 %v113
      %v115 = vpop.xlane.xlu0 %114
      %v116 = vrot.slane %v115, 4
      %v117 = vadd.f32 %v115, %v116
      %v118 = vrot.slane %v117, 2
      %v119 = vadd.f32 %v117, %v118
      %v120 = vrot.slane %v119, 1
      %v121 = vadd.f32 %v119, %v120
      %s122 = vtos %v121
      %v123 = vld [vmem:[#allocation3 + $0x1] sm:$0x1]
      %v124 = vsel %vm90, %v123, 0.0
      %125 = vadd.xlane.f32.xlu0 %v124
      %v126 = vpop.xlane.xlu0 %125
      %v127 = vrot.slane %v126, 4
      %v128 = vadd.f32 %v126, %v127
      %v129 = vrot.slane %v128, 2
      %v130 = vadd.f32 %v128, %v129
      %v131 = vrot.slane %v130, 1
      %v132 = vadd.f32 %v130, %v131
      %s133 = vtos %v132
      %v134 = vld [vmem:[#allocation2 + $0x2] sm:$0x1]
      %v135 = vsel %vm90, %v134, 0.0
      %136 = vadd.xlane.f32.xlu0 %v135
      %v137 = vpop.xlane.xlu0 %136
      %v138 = vrot.slane %v137, 4
      %v139 = vadd.f32 %v137, %v138
      %v140 = vrot.slane %v139, 2
      %v141 = vadd.f32 %v139, %v140
      %v142 = vrot.slane %v141, 1
      %v143 = vadd.f32 %v141, %v142
      %s144 = vtos %v143
      %s145 = sadd.f32 %s100, 0.0
      %s146 = sadd.f32 %s145, %s111
      %s147 = ssub.f32 %s144, %s146
      %s148 = sadd.f32 %s122, 0.0
      %s149 = sadd.f32 %s148, %s133
      %s150 = ssub.f32 256.0, %s149
      %v151 = vstv %s122
      %v152 = vrcp.pop %v151
      %s153 = vtos %v152
      %s154 = smul.f32 %s100, %s153
      %v155 = vstv %s133
      %v156 = vrcp.pop %v155
      %s157 = vtos %v156
      %s158 = smul.f32 %s111, %s157
      %v159 = vstv %s150
      %v160 = vrcp.pop %v159
      %s161 = vtos %v160
      %s162 = smul.f32 %s147, %s161
      %s163 = ssub.f32 %s154, %s158
      %s164 = sand.u32 2147483647, %s163
      %s165 = ssub.f32 %s154, %s162
      %s166 = sand.u32 2147483647, %s165
      %s167 = sadd.f32 %s164, %s166
      %s168 = ssub.f32 %s158, %s162
      %s169 = sand.u32 2147483647, %s168
      %s170 = sadd.f32 %s167, %s169
      %s171 = smul.f32 %s170, 0.33333334
      %v172 = vstv %s171
      %vm173 = vcmask 0
      %174 = vst.msk [vmem:[#allocation7] sm:$0x1] %vm173, %v172
    $region21: #{tpu_custom_call.1} parent=1 // pred_fallthru
      _
    // Predicated region
    $region22: #{tpu_custom_call.1} parent=1 // pred_check
      _
    $region23: #{tpu_custom_call.1} parent=1 // pred_check_branch
      %176 = sbr.rel (0) target = $region25
    $region24: #{tpu_custom_call.1} parent=1 // pred_region
      %s178 = ssub.s32 16, 16
      %179 = vsyncadd [#allocation6], %s178
      %s181 = sshll.u32 [#allocation7], 4
      %s182 = int_to_ptr.vmem [resolvable:$true] %s181
      %184 = dma.vmem_to_hbm [thread:$0]  %s182, 16, %s2, [#allocation6]
    $region25: #{tpu_custom_call.1} parent=1 // pred_fallthru
      _
    // Predicated region
    $region26: #{tpu_custom_call.1} parent=1 // pred_check
      _
    $region27: #{tpu_custom_call.1} parent=1 // pred_check_branch
      %186 = sbr.rel (0) target = $region29
    $region28: #{tpu_custom_call.1} parent=1 // pred_region
      %187 = dma.done [#allocation6], 16
    $region29: #{tpu_custom_call.1} parent=1 // pred_fallthru
      _
    %188 = vsyncpa [#allocation5], 1
    %189 = vsyncpa [#allocation6], 1

</llo_original>
